<compile_context>
chip_gen: v5e
topology: v5e:2x2
jax: 0.10.0
libtpu: 0.0.40
codegen_flags: <defaults>
</compile_context>

<pallas_src>
import functools

import jax
import jax.numpy as jnp
import numpy as np
from jax import lax
from jax.experimental import pallas as pl
from jax.experimental.pallas import tpu as pltpu


# ---------------------------------------------------------------------------
# Parameter transforms (match param.pos2real / param.real2pos semantics).
# ---------------------------------------------------------------------------
def pos2real(x):  # inverse softplus
    return jnp.log(jnp.expm1(x))


def real2pos(x):  # softplus
    return jax.nn.softplus(x)


# ---------------------------------------------------------------------------
# Pallas kernel:  alpha * (E @ T^T) + beta * (|e|^2 + |t|^2) + gamma
#   - E tile (tm, tk), T tile (tn, tk): contract last dims on the MXU.
#   - Accumulate straight into the resident output block across the k axis.
#   - |e|^2 / |t|^2 arrive precomputed; consumed only in the final k step.
# ---------------------------------------------------------------------------
def _plda_score_kernel(coef_ref, e_ref, t_ref, e2_ref, t2_ref, o_ref):
    k = pl.program_id(2)
    nk = pl.num_programs(2)

    dots = lax.dot_general(
        e_ref[...], t_ref[...],
        dimension_numbers=(((1,), (1,)), ((), ())),
        preferred_element_type=jnp.float32)

    @pl.when(k == 0)
    def _():
        o_ref[...] = dots

    @pl.when(k != 0)
    def _():
        o_ref[...] = o_ref[...] + dots

    @pl.when(k == nk - 1)
    def _():
        alpha = coef_ref[0]
        beta = coef_ref[1]
        gamma = coef_ref[2]
        o_ref[...] = (alpha * o_ref[...]
                      + beta * (e2_ref[...] + t2_ref[...])
                      + gamma)


def _plda_coeffs(b, w, dim, by_the_book):
    b = jnp.asarray(b, jnp.float32)
    w = jnp.asarray(w, jnp.float32)
    tot = b + w
    denom = w * (2.0 * b + w)          # = tot^2 - b^2
    alpha = b / denom
    if by_the_book:
        beta = -0.5 * (b * b) / (tot * denom)
        gamma = 0.5 * dim * jnp.log((tot * tot) / denom)
    else:
        beta = jnp.zeros_like(alpha)
        gamma = jnp.zeros_like(alpha)
    return jnp.stack([alpha, beta, gamma]).astype(jnp.float32)


def _round_up(x, m):
    return ((x + m - 1) // m) * m


def _pad2(x, rows, cols):
    pr, pc = rows - x.shape[0], cols - x.shape[1]
    if pr or pc:
        x = jnp.pad(x, ((0, pr), (0, pc)))
    return x


@functools.partial(jax.jit,
                   static_argnames=("by_the_book", "len_norm", "tm", "tn", "tk"))
def score_plda_sph_centroids_pallas(enroll, test, b, w, by_the_book=True,
                                    len_norm=False, tm=256, tn=512, tk=None):
    ne, d = enroll.shape
    nt, d2 = test.shape
    assert d == d2, "enroll / test embedding dims must match"

    if len_norm:
        # Normalize in f32, keep the storage dtype of the inputs.
        e32 = enroll.astype(jnp.float32)
        t32 = test.astype(jnp.float32)
        enroll = (e32 / jnp.linalg.norm(e32, axis=-1, keepdims=True)).astype(enroll.dtype)
        test = (t32 / jnp.linalg.norm(t32, axis=-1, keepdims=True)).astype(test.dtype)

    # Precompute the squared norms ONCE (f32), instead of redundantly reducing
    # them inside every (i, j) tile of the kernel.
    e32 = enroll.astype(jnp.float32)
    t32 = test.astype(jnp.float32)
    e2 = jnp.sum(e32 * e32, axis=-1, keepdims=True)        # (Ne, 1)
    t2 = jnp.sum(t32 * t32, axis=-1)[None, :]              # (1, Nt)

    # Tile selection: large MXU-filling tiles, full-D contraction by default.
    tm_eff = min(tm, _round_up(ne, 8))
    tn_eff = min(tn, _round_up(nt, 128))
    tk_eff = _round_up(d, 128) if tk is None else min(tk, _round_up(d, 128))
    tk_eff = min(tk_eff, 2048)     # keep double-buffered tiles well inside VMEM

    ne_p = _round_up(ne, tm_eff)
    nt_p = _round_up(nt, tn_eff)
    d_p = _round_up(d, tk_eff)

    # Zero-padding is exact: padded rows/cols only affect score entries that
    # are sliced away, and zero D-padding contributes nothing to dots/norms.
    # NOTE: inputs keep their original dtype (bf16 stays bf16 into the MXU;
    # accumulation is f32 via preferred_element_type).
    enroll_p = _pad2(enroll, ne_p, d_p)
    test_p = _pad2(test, nt_p, d_p)
    e2_p = _pad2(e2, ne_p, 1)
    t2_p = _pad2(t2, 1, nt_p)

    coef = _plda_coeffs(b, w, d, by_the_book)   # (3,) f32, lives in SMEM

    grid = (ne_p // tm_eff, nt_p // tn_eff, d_p // tk_eff)
    out = pl.pallas_call(
        _plda_score_kernel,
        out_shape=jax.ShapeDtypeStruct((ne_p, nt_p), jnp.float32),
        grid_spec=pltpu.PrefetchScalarGridSpec(
            num_scalar_prefetch=0,
            grid=grid,
            in_specs=[
                pl.BlockSpec(memory_space=pltpu.MemorySpace.SMEM),          # coef (3,)
                pl.BlockSpec((tm_eff, tk_eff), lambda i, j, k: (i, k)),     # enroll tile
                pl.BlockSpec((tn_eff, tk_eff), lambda i, j, k: (j, k)),     # test tile
                pl.BlockSpec((tm_eff, 1), lambda i, j, k: (i, 0)),          # |e|^2
                pl.BlockSpec((1, tn_eff), lambda i, j, k: (0, j)),          # |t|^2
            ],
            out_specs=pl.BlockSpec((tm_eff, tn_eff), lambda i, j, k: (i, j)),
        ),
        compiler_params=pltpu.CompilerParams(
            dimension_semantics=("parallel", "parallel", "arbitrary"),
            vmem_limit_bytes=32 * 1024 * 1024),   # safe on v5e/v6e/v7x
    )(coef, enroll_p, test_p, e2_p, t2_p)

    return out[:ne, :nt]


# ---------------------------------------------------------------------------
# Module analog of the PyTorch ScoreSphPLDA.
# ---------------------------------------------------------------------------
class ScoreSphPLDA:
    def __init__(self, b, w, by_the_book=True, len_norm=False):
        self.b_ = pos2real(jnp.asarray([b], jnp.float32))
        self.w_ = pos2real(jnp.asarray([w], jnp.float32))
        self.by_the_book = by_the_book
        self.len_norm = len_norm

    def get_params(self):
        return real2pos(self.b_), real2pos(self.w_)

    def __call__(self, enroll, test):
        b, w = self.get_params()
        return score_plda_sph_centroids_pallas(
            enroll, test, b[0], w[0],
            by_the_book=self.by_the_book, len_norm=self.len_norm)


# ---------------------------------------------------------------------------
# Pure-JAX reference for validation.
# ---------------------------------------------------------------------------
def score_plda_sph_centroids_ref(enroll, test, b, w, by_the_book=True, len_norm=False):
    enroll = enroll.astype(jnp.float32)
    test = test.astype(jnp.float32)
    if len_norm:
        enroll = enroll / jnp.linalg.norm(enroll, axis=-1, keepdims=True)
        test = test / jnp.linalg.norm(test, axis=-1, keepdims=True)
    d = enroll.shape[-1]
    coef = _plda_coeffs(b, w, d, by_the_book)
    dots = enroll @ test.T
    e2 = jnp.sum(enroll * enroll, axis=-1, keepdims=True)          # (Ne, 1)
    t2 = jnp.sum(test * test, axis=-1, keepdims=True).T            # (1, Nt)
    return coef[0] * dots + coef[1] * (e2 + t2) + coef[2]


if __name__ == "__main__":
    key = jax.random.PRNGKey(0)
    k1, k2, k3, k4 = jax.random.split(key, 4)

    # Case 1: tile-aligned shapes, by-the-book scoring.
    NE, NT, D = 16, 256, 256
    enroll = jax.random.normal(k1, (NE, D), dtype=jnp.float32)
    test = jax.random.normal(k2, (NT, D), dtype=jnp.float32)
    module = ScoreSphPLDA(b=0.3, w=0.1, by_the_book=True, len_norm=False)
    scores = jax.block_until_ready(module(enroll, test))
    b, w = module.get_params()
    ref = score_plda_sph_centroids_ref(enroll, test, b[0], w[0], True, False)
    np.testing.assert_allclose(np.asarray(scores), np.asarray(ref),
                               rtol=1e-4, atol=1e-4)

    # Case 2: ragged shapes (exercise padding) + len_norm path.
    NE2, NT2, D2 = 10, 200, 192
    enroll2 = jax.random.normal(k3, (NE2, D2), dtype=jnp.float32)
    test2 = jax.random.normal(k4, (NT2, D2), dtype=jnp.float32)
    module2 = ScoreSphPLDA(b=0.5, w=0.2, by_the_book=True, len_norm=True)
    scores2 = jax.block_until_ready(module2(enroll2, test2))
    b2, w2 = module2.get_params()
    ref2 = score_plda_sph_centroids_ref(enroll2, test2, b2[0], w2[0], True, True)
    np.testing.assert_allclose(np.asarray(scores2), np.asarray(ref2),
                               rtol=1e-4, atol=1e-4)

    print("KERNEL_OK")
</pallas_src>

<mosaic_0001>
module attributes {stable_mosaic.version = 11 : i64} {
  func.func @_plda_score_kernel(%arg0: i32, %arg1: i32, %arg2: i32, %arg3: memref<3xf32, #tpu.memory_space<smem>>, %arg4: memref<16x256xf32, #tpu.memory_space<vmem>>, %arg5: memref<256x256xf32, #tpu.memory_space<vmem>>, %arg6: memref<16x1xf32, #tpu.memory_space<vmem>>, %arg7: memref<1x256xf32, #tpu.memory_space<vmem>>, %arg8: memref<16x256xf32, #tpu.memory_space<vmem>>) attributes {dimension_semantics = [#tpu.dimension_semantics<parallel>, #tpu.dimension_semantics<parallel>, #tpu.dimension_semantics<arbitrary>], iteration_bounds = array<i64: 1, 1, 1>, scalar_prefetch = 0 : i64, scratch_operands = 0 : i64, tpu.core_type = #tpu.core_type<tc>, window_params = [{transform_indices = @transform_0, window_bounds = array<i64: 3>}, {transform_indices = @transform_1, window_bounds = array<i64: 16, 256>}, {transform_indices = @transform_2, window_bounds = array<i64: 256, 256>}, {transform_indices = @transform_3, window_bounds = array<i64: 16, 1>}, {transform_indices = @transform_4, window_bounds = array<i64: 1, 256>}, {transform_indices = @transform_5, window_bounds = array<i64: 16, 256>}]} {
    %c0 = arith.constant 0 : index
    %c0_0 = arith.constant 0 : index
    %0 = vector.load %arg4[%c0, %c0_0] : memref<16x256xf32, #tpu.memory_space<vmem>>, vector<16x256xf32>
    %c0_1 = arith.constant 0 : index
    %c0_2 = arith.constant 0 : index
    %1 = vector.load %arg5[%c0_1, %c0_2] : memref<256x256xf32, #tpu.memory_space<vmem>>, vector<256x256xf32>
    %cst = arith.constant dense<0.000000e+00> : vector<16x256xf32>
    %2 = tpu.matmul %0, %1, %cst {dimension_numbers = #tpu.dot_dimension_numbers<[1], [1], [0], [0], [0, 0, 1, 0], [], []>} : vector<16x256xf32>, vector<256x256xf32>, vector<16x256xf32> -> vector<16x256xf32>
    %c0_i32 = arith.constant 0 : i32
    %3 = arith.cmpi eq, %arg2, %c0_i32 : i32
    %4 = arith.extui %3 : i1 to i32
    %c0_i32_3 = arith.constant 0 : i32
    %5 = arith.cmpi ne, %4, %c0_i32_3 : i32
    scf.if %5 {
      %c0_8 = arith.constant 0 : index
      %c0_9 = arith.constant 0 : index
      %12 = vector.load %arg8[%c0_8, %c0_9] : memref<16x256xf32, #tpu.memory_space<vmem>>, vector<16x256xf32>
      tpu.vector_store %arg8[%c0_8, %c0_9], %2 {strides = array<i32>} : memref<16x256xf32, #tpu.memory_space<vmem>>, vector<16x256xf32>,
    } else {
    }
    %c0_i32_4 = arith.constant 0 : i32
    %6 = arith.cmpi ne, %arg2, %c0_i32_4 : i32
    %7 = arith.extui %6 : i1 to i32
    %c0_i32_5 = arith.constant 0 : i32
    %8 = arith.cmpi ne, %7, %c0_i32_5 : i32
    scf.if %8 {
      %c0_8 = arith.constant 0 : index
      %c0_9 = arith.constant 0 : index
      %12 = vector.load %arg8[%c0_8, %c0_9] : memref<16x256xf32, #tpu.memory_space<vmem>>, vector<16x256xf32>
      %13 = arith.addf %12, %2 : vector<16x256xf32>
      %c0_10 = arith.constant 0 : index
      %c0_11 = arith.constant 0 : index
      %14 = vector.load %arg8[%c0_10, %c0_11] : memref<16x256xf32, #tpu.memory_space<vmem>>, vector<16x256xf32>
      tpu.vector_store %arg8[%c0_10, %c0_11], %13 {strides = array<i32>} : memref<16x256xf32, #tpu.memory_space<vmem>>, vector<16x256xf32>,
    } else {
    }
    %c0_i32_6 = arith.constant 0 : i32
    %9 = arith.cmpi eq, %arg2, %c0_i32_6 : i32
    %10 = arith.extui %9 : i1 to i32
    %c0_i32_7 = arith.constant 0 : i32
    %11 = arith.cmpi ne, %10, %c0_i32_7 : i32
    scf.if %11 {
      %c0_8 = arith.constant 0 : index
      %12 = memref.load %arg3[%c0_8] : memref<3xf32, #tpu.memory_space<smem>>
      %c1 = arith.constant 1 : index
      %13 = memref.load %arg3[%c1] : memref<3xf32, #tpu.memory_space<smem>>
      %c2 = arith.constant 2 : index
      %14 = memref.load %arg3[%c2] : memref<3xf32, #tpu.memory_space<smem>>
      %c0_9 = arith.constant 0 : index
      %c0_10 = arith.constant 0 : index
      %15 = vector.load %arg8[%c0_9, %c0_10] : memref<16x256xf32, #tpu.memory_space<vmem>>, vector<16x256xf32>
      %16 = vector.broadcast %12 : f32 to vector<16x256xf32>
      %17 = arith.mulf %16, %15 : vector<16x256xf32>
      %c0_11 = arith.constant 0 : index
      %c0_12 = arith.constant 0 : index
      %18 = vector.load %arg6[%c0_11, %c0_12] : memref<16x1xf32, #tpu.memory_space<vmem>>, vector<16x1xf32>
      %c0_13 = arith.constant 0 : index
      %c0_14 = arith.constant 0 : index
      %19 = vector.load %arg7[%c0_13, %c0_14] : memref<1x256xf32, #tpu.memory_space<vmem>>, vector<1x256xf32>
      %20 = vector.broadcast %18 : vector<16x1xf32> to vector<16x256xf32>
      %21 = vector.broadcast %19 : vector<1x256xf32> to vector<16x256xf32>
      %22 = arith.addf %20, %21 : vector<16x256xf32>
      %23 = vector.broadcast %13 : f32 to vector<16x256xf32>
      %24 = arith.mulf %23, %22 : vector<16x256xf32>
      %25 = arith.addf %17, %24 : vector<16x256xf32>
      %26 = vector.broadcast %14 : f32 to vector<16x256xf32>
      %27 = arith.addf %25, %26 : vector<16x256xf32>
      %c0_15 = arith.constant 0 : index
      %c0_16 = arith.constant 0 : index
      %28 = vector.load %arg8[%c0_15, %c0_16] : memref<16x256xf32, #tpu.memory_space<vmem>>, vector<16x256xf32>
      tpu.vector_store %arg8[%c0_15, %c0_16], %27 {strides = array<i32>} : memref<16x256xf32, #tpu.memory_space<vmem>>, vector<16x256xf32>,
    } else {
    }
    return
  }
  func.func @transform_0(%arg0: i32, %arg1: i32, %arg2: i32) -> i32 {
    %c0_i32 = arith.constant 0 : i32
    %c0_i32_0 = arith.constant 0 : i32
    return %c0_i32 : i32
  }
  func.func @transform_1(%arg0: i32, %arg1: i32, %arg2: i32) -> (i32, i32) {
    %c0_i32 = arith.constant 0 : i32
    return %arg0, %arg2 : i32, i32
  }
  func.func @transform_2(%arg0: i32, %arg1: i32, %arg2: i32) -> (i32, i32) {
    %c0_i32 = arith.constant 0 : i32
    return %arg1, %arg2 : i32, i32
  }
  func.func @transform_3(%arg0: i32, %arg1: i32, %arg2: i32) -> (i32, i32) {
    %c0_i32 = arith.constant 0 : i32
    %c0_i32_0 = arith.constant 0 : i32
    return %arg0, %c0_i32 : i32, i32
  }
  func.func @transform_4(%arg0: i32, %arg1: i32, %arg2: i32) -> (i32, i32) {
    %c0_i32 = arith.constant 0 : i32
    %c0_i32_0 = arith.constant 0 : i32
    return %c0_i32, %arg1 : i32, i32
  }
  func.func @transform_5(%arg0: i32, %arg1: i32, %arg2: i32) -> (i32, i32) {
    %c0_i32 = arith.constant 0 : i32
    return %arg0, %arg1 : i32, i32
  }
}

</mosaic_0001>

<llo_original>
// kernel: score_plda_sph_centroids_pallas.1
$region0: #{score_plda_sph_centroids_pallas.1}
  #allocation0 [shape = 'u32[]', space=smem, size = 0x4, offset = 0x4, fixed_abs, tag = 'smem constant byte address 0x4 - core index']
  #allocation1 [shape = 'u32[72,128]{1,0:T(1,128)}', space=vmem, size = 0x9000, scoped, tag = 'internal scratch']
  %s0 = inlined_call_operand.vmem [shape: f32[3], index: 0, kind: input, shape index: {}]
  %s1 = inlined_call_operand.vmem [shape: f32[16,256], index: 1, kind: input, shape index: {}]
  %s2 = inlined_call_operand.vmem [shape: f32[256,256], index: 2, kind: input, shape index: {}]
  %s3 = inlined_call_operand.vmem [shape: f32[16,1], index: 3, kind: input, shape index: {}]
  %s4 = inlined_call_operand.vmem [shape: f32[1,256], index: 4, kind: input, shape index: {}]
  %s5 = inlined_call_operand.hbm [shape: f32[16,256], index: 5, kind: output, shape index: {}]
  %s6 = sld [smem:[#allocation0]]
  $region46: #{score_plda_sph_centroids_pallas.1} parent=0
    _
  %s8 = ssub.s32 1, %s6
  %s9 = scalar_select 0, %s8, %s6
  $region1: #{score_plda_sph_centroids_pallas.1} parent=0
    #allocation2 [shape = 'u8[512]{0}', space=smem, size = 0x200, scoped, tag = 'input window, operand 0, single buffered']
    #allocation3 [shape = 's32[1]{0}', space=sflag, size = 0x4, scoped, tag = 'scoped memory for score_plda_sph_centroids_pallas.1']
    #allocation4 [shape = 's32[1]{0}', space=sflag, size = 0x4, scoped, tag = 'scoped memory for score_plda_sph_centroids_pallas.1']
    #allocation5 [shape = 'u8[16384]{0}', space=vmem, size = 0x4000, scoped, tag = 'output window, operand 0, single buffered']
    %10 = vsyncpa [#allocation4], 0
    %11 = vsyncpa [#allocation3], 0
    // Predicated region
    $region2: #{score_plda_sph_centroids_pallas.1} parent=1 // pred_check
      _
    $region3: #{score_plda_sph_centroids_pallas.1} parent=1 // pred_check_branch
      %13 = sbr.rel (0) target = $region5
    $region4: #{score_plda_sph_centroids_pallas.1} parent=1 // pred_region
      %15 = vsyncadd [#allocation4], 0
      %s17 = sshll.u32 %s0, 4
      %s18 = int_to_ptr.vmem [resolvable:$true] %s17
      %20 = dma.vmem_to_smem %s18, 16, [#allocation2], [#allocation4]
    $region5: #{score_plda_sph_centroids_pallas.1} parent=1 // pred_fallthru
      _
    // Predicated region
    $region6: #{score_plda_sph_centroids_pallas.1} parent=1 // pred_check
      _
    $region7: #{score_plda_sph_centroids_pallas.1} parent=1 // pred_check_branch
      %22 = sbr.rel (0) target = $region9
    $region8: #{score_plda_sph_centroids_pallas.1} parent=1 // pred_region
      _
    $region9: #{score_plda_sph_centroids_pallas.1} parent=1 // pred_fallthru
      _
    // Predicated region
    $region10: #{score_plda_sph_centroids_pallas.1} parent=1 // pred_check
      _
    $region11: #{score_plda_sph_centroids_pallas.1} parent=1 // pred_check_branch
      %24 = sbr.rel (0) target = $region13
    $region12: #{score_plda_sph_centroids_pallas.1} parent=1 // pred_region
      _
    $region13: #{score_plda_sph_centroids_pallas.1} parent=1 // pred_fallthru
      _
    // Predicated region
    $region14: #{score_plda_sph_centroids_pallas.1} parent=1 // pred_check
      _
    $region15: #{score_plda_sph_centroids_pallas.1} parent=1 // pred_check_branch
      %26 = sbr.rel (0) target = $region17
    $region16: #{score_plda_sph_centroids_pallas.1} parent=1 // pred_region
      _
    $region17: #{score_plda_sph_centroids_pallas.1} parent=1 // pred_fallthru
      _
    // Predicated region
    $region18: #{score_plda_sph_centroids_pallas.1} parent=1 // pred_check
      _
    $region19: #{score_plda_sph_centroids_pallas.1} parent=1 // pred_check_branch
      %28 = sbr.rel (0) target = $region21
    $region20: #{score_plda_sph_centroids_pallas.1} parent=1 // pred_region
      _
    $region21: #{score_plda_sph_centroids_pallas.1} parent=1 // pred_fallthru
      _
    // Predicated region
    $region22: #{score_plda_sph_centroids_pallas.1} parent=1 // pred_check
      _
    $region23: #{score_plda_sph_centroids_pallas.1} parent=1 // pred_check_branch
      %30 = sbr.rel (0) target = $region25
    $region24: #{score_plda_sph_centroids_pallas.1} parent=1 // pred_region
      %32 = dma.done [#allocation4], 16
    $region25: #{score_plda_sph_centroids_pallas.1} parent=1 // pred_fallthru
      _
    %33 = sfence
    %v34 = vld [vmem:[%s1] sm:$0xff]
    %v35 = vld [vmem:[%s1 + $0x8] sm:$0xff]
    %v36 = vld [vmem:[%s1 + $0x10] sm:$0xff]
    %v37 = vld [vmem:[%s1 + $0x18] sm:$0xff]
    %v38 = vld [vmem:[%s2] sm:$0xff]
    %v39 = vld [vmem:[%s2 + $0x8] sm:$0xff]
    %v40 = vld [vmem:[%s2 + $0x10] sm:$0xff]
    %v41 = vld [vmem:[%s2 + $0x18] sm:$0xff]
    %v42 = vld [vmem:[%s2 + $0x20] sm:$0xff]
    %v43 = vld [vmem:[%s2 + $0x28] sm:$0xff]
    %v44 = vld [vmem:[%s2 + $0x30] sm:$0xff]
    %v45 = vld [vmem:[%s2 + $0x38] sm:$0xff]
    %v46 = vld [vmem:[%s2 + $0x40] sm:$0xff]
    %v47 = vld [vmem:[%s2 + $0x48] sm:$0xff]
    %v48 = vld [vmem:[%s2 + $0x50] sm:$0xff]
    %v49 = vld [vmem:[%s2 + $0x58] sm:$0xff]
    %v50 = vld [vmem:[%s2 + $0x60] sm:$0xff]
    %v51 = vld [vmem:[%s2 + $0x68] sm:$0xff]
    %v52 = vld [vmem:[%s2 + $0x70] sm:$0xff]
    %v53 = vld [vmem:[%s2 + $0x78] sm:$0xff]
    %v54 = vld [vmem:[%s2 + $0x80] sm:$0xff]
    %v55 = vld [vmem:[%s2 + $0x88] sm:$0xff]
    %v56 = vld [vmem:[%s2 + $0x90] sm:$0xff]
    %v57 = vld [vmem:[%s2 + $0x98] sm:$0xff]
    %v58 = vld [vmem:[%s2 + $0xa0] sm:$0xff]
    %v59 = vld [vmem:[%s2 + $0xa8] sm:$0xff]
    %v60 = vld [vmem:[%s2 + $0xb0] sm:$0xff]
    %v61 = vld [vmem:[%s2 + $0xb8] sm:$0xff]
    %v62 = vld [vmem:[%s2 + $0xc0] sm:$0xff]
    %v63 = vld [vmem:[%s2 + $0xc8] sm:$0xff]
    %v64 = vld [vmem:[%s2 + $0xd0] sm:$0xff]
    %v65 = vld [vmem:[%s2 + $0xd8] sm:$0xff]
    %v66 = vld [vmem:[%s2 + $0xe0] sm:$0xff]
    %v67 = vld [vmem:[%s2 + $0xe8] sm:$0xff]
    %v68 = vld [vmem:[%s2 + $0xf0] sm:$0xff]
    %v69 = vld [vmem:[%s2 + $0xf8] sm:$0xff]
    %v70 = vld [vmem:[%s2 + $0x100] sm:$0xff]
    %v71 = vld [vmem:[%s2 + $0x108] sm:$0xff]
    %v72 = vld [vmem:[%s2 + $0x110] sm:$0xff]
    %v73 = vld [vmem:[%s2 + $0x118] sm:$0xff]
    %v74 = vld [vmem:[%s2 + $0x120] sm:$0xff]
    %v75 = vld [vmem:[%s2 + $0x128] sm:$0xff]
    %v76 = vld [vmem:[%s2 + $0x130] sm:$0xff]
    %v77 = vld [vmem:[%s2 + $0x138] sm:$0xff]
    %v78 = vld [vmem:[%s2 + $0x140] sm:$0xff]
    %v79 = vld [vmem:[%s2 + $0x148] sm:$0xff]
    %v80 = vld [vmem:[%s2 + $0x150] sm:$0xff]
    %v81 = vld [vmem:[%s2 + $0x158] sm:$0xff]
    %v82 = vld [vmem:[%s2 + $0x160] sm:$0xff]
    %v83 = vld [vmem:[%s2 + $0x168] sm:$0xff]
    %v84 = vld [vmem:[%s2 + $0x170] sm:$0xff]
    %v85 = vld [vmem:[%s2 + $0x178] sm:$0xff]
    %v86 = vld [vmem:[%s2 + $0x180] sm:$0xff]
    %v87 = vld [vmem:[%s2 + $0x188] sm:$0xff]
    %v88 = vld [vmem:[%s2 + $0x190] sm:$0xff]
    %v89 = vld [vmem:[%s2 + $0x198] sm:$0xff]
    %v90 = vld [vmem:[%s2 + $0x1a0] sm:$0xff]
    %v91 = vld [vmem:[%s2 + $0x1a8] sm:$0xff]
    %v92 = vld [vmem:[%s2 + $0x1b0] sm:$0xff]
    %v93 = vld [vmem:[%s2 + $0x1b8] sm:$0xff]
    %v94 = vld [vmem:[%s2 + $0x1c0] sm:$0xff]
    %v95 = vld [vmem:[%s2 + $0x1c8] sm:$0xff]
    %v96 = vld [vmem:[%s2 + $0x1d0] sm:$0xff]
    %v97 = vld [vmem:[%s2 + $0x1d8] sm:$0xff]
    %v98 = vld [vmem:[%s2 + $0x1e0] sm:$0xff]
    %v99 = vld [vmem:[%s2 + $0x1e8] sm:$0xff]
    %v100 = vld [vmem:[%s2 + $0x1f0] sm:$0xff]
    %v101 = vld [vmem:[%s2 + $0x1f8] sm:$0xff]
    %102 = vmatpush.xpose.msra.mxu0 %v68
    %103 = vmatpush.xpose.msra.mxu0 %v66
    %104 = vmatpush.xpose.msra.mxu0 %v64
    %105 = vmatpush.xpose.msra.mxu0 %v62
    %106 = vmatpush.xpose.msra.mxu0 %v60
    %107 = vmatpush.xpose.msra.mxu0 %v58
    %108 = vmatpush.xpose.msra.mxu0 %v56
    %109 = vmatpush.xpose.msra.mxu0 %v54
    %110 = vmatpush.xpose.msra.mxu0 %v52
    %111 = vmatpush.xpose.msra.mxu0 %v50
    %112 = vmatpush.xpose.msra.mxu0 %v48
    %113 = vmatpush.xpose.msra.mxu0 %v46
    %114 = vmatpush.xpose.msra.mxu0 %v44
    %115 = vmatpush.xpose.msra.mxu0 %v42
    %116 = vmatpush.xpose.msra.mxu0 %v40
    %117 = vmatpush.xpose.msra.mxu0 %v38
    %118 = vmatmul.f32.gmra.mxu0 %v34
    %v119 = vpop.f32.mrf.mxu0
    %v120 = vadd.f32 0.0, %v119
    %121 = vmatmul.f32.gmra.mxu0 %v36
    %v122 = vpop.f32.mrf.mxu0
    %v123 = vadd.f32 0.0, %v122
    %124 = vdwg.mxu0
    %125 = vmatpush.xpose.msra.mxu0 %v69
    %126 = vmatpush.xpose.msra.mxu0 %v67
    %127 = vmatpush.xpose.msra.mxu0 %v65
    %128 = vmatpush.xpose.msra.mxu0 %v63
    %129 = vmatpush.xpose.msra.mxu0 %v61
    %130 = vmatpush.xpose.msra.mxu0 %v59
    %131 = vmatpush.xpose.msra.mxu0 %v57
    %132 = vmatpush.xpose.msra.mxu0 %v55
    %133 = vmatpush.xpose.msra.mxu0 %v53
    %134 = vmatpush.xpose.msra.mxu0 %v51
    %135 = vmatpush.xpose.msra.mxu0 %v49
    %136 = vmatpush.xpose.msra.mxu0 %v47
    %137 = vmatpush.xpose.msra.mxu0 %v45
    %138 = vmatpush.xpose.msra.mxu0 %v43
    %139 = vmatpush.xpose.msra.mxu0 %v41
    %140 = vmatpush.xpose.msra.mxu0 %v39
    %141 = vmatmul.f32.gmra.mxu0 %v35
    %v142 = vpop.f32.mrf.mxu0
    %v143 = vadd.f32 %v120, %v142
    %144 = vmatmul.f32.gmra.mxu0 %v37
    %v145 = vpop.f32.mrf.mxu0
    %v146 = vadd.f32 %v123, %v145
    %147 = vdwg.mxu0
    %148 = vmatpush.xpose.msra.mxu0 %v100
    %149 = vmatpush.xpose.msra.mxu0 %v98
    %150 = vmatpush.xpose.msra.mxu0 %v96
    %151 = vmatpush.xpose.msra.mxu0 %v94
    %152 = vmatpush.xpose.msra.mxu0 %v92
    %153 = vmatpush.xpose.msra.mxu0 %v90
    %154 = vmatpush.xpose.msra.mxu0 %v88
    %155 = vmatpush.xpose.msra.mxu0 %v86
    %156 = vmatpush.xpose.msra.mxu0 %v84
    %157 = vmatpush.xpose.msra.mxu0 %v82
    %158 = vmatpush.xpose.msra.mxu0 %v80
    %159 = vmatpush.xpose.msra.mxu0 %v78
    %160 = vmatpush.xpose.msra.mxu0 %v76
    %161 = vmatpush.xpose.msra.mxu0 %v74
    %162 = vmatpush.xpose.msra.mxu0 %v72
    %163 = vmatpush.xpose.msra.mxu0 %v70
    %164 = vmatmul.f32.gmra.mxu0 %v34
    %v165 = vpop.f32.mrf.mxu0
    %v166 = vadd.f32 0.0, %v165
    %167 = vmatmul.f32.gmra.mxu0 %v36
    %v168 = vpop.f32.mrf.mxu0
    %v169 = vadd.f32 0.0, %v168
    %170 = vdwg.mxu0
    %171 = vmatpush.xpose.msra.mxu0 %v101
    %172 = vmatpush.xpose.msra.mxu0 %v99
    %173 = vmatpush.xpose.msra.mxu0 %v97
    %174 = vmatpush.xpose.msra.mxu0 %v95
    %175 = vmatpush.xpose.msra.mxu0 %v93
    %176 = vmatpush.xpose.msra.mxu0 %v91
    %177 = vmatpush.xpose.msra.mxu0 %v89
    %178 = vmatpush.xpose.msra.mxu0 %v87
    %179 = vmatpush.xpose.msra.mxu0 %v85
    %180 = vmatpush.xpose.msra.mxu0 %v83
    %181 = vmatpush.xpose.msra.mxu0 %v81
    %182 = vmatpush.xpose.msra.mxu0 %v79
    %183 = vmatpush.xpose.msra.mxu0 %v77
    %184 = vmatpush.xpose.msra.mxu0 %v75
    %185 = vmatpush.xpose.msra.mxu0 %v73
    %186 = vmatpush.xpose.msra.mxu0 %v71
    %187 = vmatmul.f32.gmra.mxu0 %v35
    %v188 = vpop.f32.mrf.mxu0
    %v189 = vadd.f32 %v166, %v188
    %190 = vmatmul.f32.gmra.mxu0 %v37
    %v191 = vpop.f32.mrf.mxu0
    %v192 = vadd.f32 %v169, %v191
    %193 = vdwg.mxu0
    %p194 = scmp.eq.s32.totalorder 0, 0
    // Predicated region
    $region26: #{score_plda_sph_centroids_pallas.1} parent=1 // pred_check
      %p195 = pneg %p194
    $region27: #{score_plda_sph_centroids_pallas.1} parent=1 // pred_check_branch
      %197 = sbr.rel (%p195) target = $region29
    $region28: #{score_plda_sph_centroids_pallas.1} parent=1 // pred_region
      %198 = vst [vmem:[#allocation5] sm:$0xff] %v143
      %199 = vst [vmem:[#allocation5 + $0x8] sm:$0xff] %v189
      %200 = vst [vmem:[#allocation5 + $0x10] sm:$0xff] %v146
      %201 = vst [vmem:[#allocation5 + $0x18] sm:$0xff] %v192
    $region29: #{score_plda_sph_centroids_pallas.1} parent=1 // pred_fallthru
      _
    %p202 = scmp.ne.s32.totalorder 0, 0
    // Predicated region
    $region30: #{score_plda_sph_centroids_pallas.1} parent=1 // pred_check
      %p203 = pneg %p202
    $region31: #{score_plda_sph_centroids_pallas.1} parent=1 // pred_check_branch
      %205 = sbr.rel (%p203) target = $region33
    $region32: #{score_plda_sph_centroids_pallas.1} parent=1 // pred_region
      %v206 = vld [vmem:[#allocation5] sm:$0xff]
      %v207 = vld [vmem:[#allocation5 + $0x8] sm:$0xff]
      %v208 = vld [vmem:[#allocation5 + $0x10] sm:$0xff]
      %v209 = vld [vmem:[#allocation5 + $0x18] sm:$0xff]
      %v210 = vadd.f32 %v206, %v143
      %v211 = vadd.f32 %v207, %v189
      %v212 = vadd.f32 %v208, %v146
      %v213 = vadd.f32 %v209, %v192
      %214 = vst [vmem:[#allocation5] sm:$0xff] %v210
      %215 = vst [vmem:[#allocation5 + $0x8] sm:$0xff] %v211
      %216 = vst [vmem:[#allocation5 + $0x10] sm:$0xff] %v212
      %217 = vst [vmem:[#allocation5 + $0x18] sm:$0xff] %v213
    $region33: #{score_plda_sph_centroids_pallas.1} parent=1 // pred_fallthru
      _
    // Predicated region
    $region34: #{score_plda_sph_centroids_pallas.1} parent=1 // pred_check
      %p218 = pneg %p194
    $region35: #{score_plda_sph_centroids_pallas.1} parent=1 // pred_check_branch
      %220 = sbr.rel (%p218) target = $region37
    $region36: #{score_plda_sph_centroids_pallas.1} parent=1 // pred_region
      %s221 = sld [smem:[#allocation2]]
      %s222 = sld [smem:[#allocation2 + $0x1]]
      %s223 = sld [smem:[#allocation2 + $0x2]]
      %v224 = vld [vmem:[#allocation5] sm:$0xff]
      %v225 = vld [vmem:[#allocation5 + $0x8] sm:$0xff]
      %v226 = vld [vmem:[#allocation5 + $0x10] sm:$0xff]
      %v227 = vld [vmem:[#allocation5 + $0x18] sm:$0xff]
      %v228 = vstv %s221
      %v229 = vmul.f32 %v228, %v224
      %v230 = vmul.f32 %v228, %v225
      %v231 = vmul.f32 %v228, %v226
      %v232 = vmul.f32 %v228, %v227
      %v233 = vld [vmem:[%s3] sm:$0xff]
      %v234 = vld [vmem:[%s3 + $0x8] sm:$0xff]
      %v235 = vld [vmem:[%s4] sm:$0x3]
      %237 = vset.pattern.permute.xlu0 0
      %238 = vperm.xlu0 %237, %v233
      %v239 = vpop.permute.xlu0 %238
      %242 = vset.pattern.permute.xlu0 0
      %243 = vperm.xlu0 %242, %v234
      %v244 = vpop.permute.xlu0 %243
      %v247 = vperm.slane %v235, 0
      %v248 = vperm.slane %v235, 1
      %v251 = vadd.f32 %v239, %v247
      %v252 = vadd.f32 %v239, %v248
      %v253 = vadd.f32 %v244, %v247
      %v254 = vadd.f32 %v244, %v248
      %v255 = vstv %s222
      %v256 = vmul.f32 %v255, %v251
      %v257 = vmul.f32 %v255, %v252
      %v258 = vmul.f32 %v255, %v253
      %v259 = vmul.f32 %v255, %v254
      %v260 = vadd.f32 %v229, %v256
      %v261 = vadd.f32 %v230, %v257
      %v262 = vadd.f32 %v231, %v258
      %v263 = vadd.f32 %v232, %v259
      %v264 = vstv %s223
      %v265 = vadd.f32 %v260, %v264
      %v266 = vadd.f32 %v261, %v264
      %v267 = vadd.f32 %v262, %v264
      %v268 = vadd.f32 %v263, %v264
      %269 = vst [vmem:[#allocation5] sm:$0xff] %v265
      %270 = vst [vmem:[#allocation5 + $0x8] sm:$0xff] %v266
      %271 = vst [vmem:[#allocation5 + $0x10] sm:$0xff] %v267
      %272 = vst [vmem:[#allocation5 + $0x18] sm:$0xff] %v268
    $region37: #{score_plda_sph_centroids_pallas.1} parent=1 // pred_fallthru
      _
    // Predicated region
    $region38: #{score_plda_sph_centroids_pallas.1} parent=1 // pred_check
      _
    $region39: #{score_plda_sph_centroids_pallas.1} parent=1 // pred_check_branch
      %274 = sbr.rel (0) target = $region41
    $region40: #{score_plda_sph_centroids_pallas.1} parent=1 // pred_region
      %276 = vsyncadd [#allocation3], 0
      %s277 = sshll.u32 [#allocation5], 4
      %s278 = int_to_ptr.vmem [resolvable:$true] %s277
      %s279 = sshll.u32 %s5, 4
      %s280 = int_to_ptr.hbm [resolvable:$true] %s279
      %285 = dma.vmem_to_hbm [thread:$0]  %s278, 512, %s280, [#allocation3], 256, 256, 16
    $region41: #{score_plda_sph_centroids_pallas.1} parent=1 // pred_fallthru
      _
    // Predicated region
    $region42: #{score_plda_sph_centroids_pallas.1} parent=1 // pred_check
      _
    $region43: #{score_plda_sph_centroids_pallas.1} parent=1 // pred_check_branch
      %287 = sbr.rel (0) target = $region45
    $region44: #{score_plda_sph_centroids_pallas.1} parent=1 // pred_region
      %289 = dma.done [#allocation3], 512
    $region45: #{score_plda_sph_centroids_pallas.1} parent=1 // pred_fallthru
      _
    %290 = vsyncpa [#allocation3], 1
    %291 = vsyncpa [#allocation4], 1

</llo_original>
